<compile_context>
chip_gen: v7x
topology: tpu7x:2x2x1
jax: 0.10.0
libtpu: 0.0.40
codegen_flags: <defaults>
</compile_context>

<pallas_src>
import functools

import jax
import jax.numpy as jnp
from jax.experimental import pallas as pl
from jax.experimental.pallas import tpu as pltpu


def _round_up(x, m):
    return ((x + m - 1) // m) * m


# ----------------------------------------------------------------------------
# In-kernel focal-loss helpers (traced inside the Pallas kernel).
# ----------------------------------------------------------------------------
def _focal_pow(one_m, gamma):
    g = float(gamma)
    if g == 2.0:
        return one_m * one_m                      # VPU multiply, keeps EUP free
    if g == 1.0:
        return one_m
    if g == 0.0:
        return jnp.ones_like(one_m)
    if g == float(int(g)) and 0.0 < g <= 4.0:
        r = one_m
        for _ in range(int(g) - 1):
            r = r * one_m
        return r
    return jnp.power(one_m, g)


def _focal_rows(pt, aw, valid, gamma):
    # Fold the validity mask into aw / pt with two selects (blocks NaN/garbage
    # from out-of-range rows of ragged/oversized blocks).
    aw = jnp.where(valid, aw, 0.0)
    pt = jnp.where(valid, pt, 1.0)
    # TODO(synk): log(pt) intentionally unguarded (matches the PyTorch module;
    # an exact-zero target probability yields -inf just like torch).
    return -aw * _focal_pow(1.0 - pt, gamma) * jnp.log(pt)


# ----------------------------------------------------------------------------
# Fused Pallas kernel: obj loss (step 0) + tiled pred loss, single scalar out.
# ----------------------------------------------------------------------------
def _fused_focal_kernel(obj_p_ref, obj_aux_ref, edge_p_ref, edge_aux_ref,
                        out_ref, acc_ref, *, gamma, n_obj, n_edge, tm):
    i = pl.program_id(0)

    @pl.when(i == 0)
    def _():
        # ---- object loss: one small block, computed once --------------------
        p = obj_p_ref[...].astype(jnp.float32)              # (r_obj, 160)
        aux = obj_aux_ref[...]                               # (r_obj, 2) int32
        aw = pltpu.bitcast(aux[:, 0:1], jnp.float32)         # weight bits
        tgt = aux[:, 1:2]                                    # target class
        r, c = p.shape
        cls = jax.lax.broadcasted_iota(jnp.int32, (r, c), 1)
        pt = jnp.sum(jnp.where(cls == tgt, p, 0.0), axis=-1, keepdims=True)
        row = jax.lax.broadcasted_iota(jnp.int32, (r, 1), 0)
        loss = _focal_rows(pt, aw, row < n_obj, gamma)
        acc_ref[...] = jnp.sum(loss, keepdims=True)          # init accumulator

    # ---- predicate loss: one row-tile per grid step --------------------------
    p = edge_p_ref[...].astype(jnp.float32)                  # (tm, 27)
    aux = edge_aux_ref[...]                                   # (tm, 2) int32
    aw = pltpu.bitcast(aux[:, 0:1], jnp.float32)              # weight bits
    hotmask = aux[:, 1:2]                                     # 27-bit class mask
    r, c = p.shape
    cls = jax.lax.broadcasted_iota(jnp.int32, (r, c), 1)
    hot = jnp.bitwise_and(jnp.right_shift(hotmask, cls), 1)   # multi-hot expand
    pt = jnp.sum(jnp.where(hot == 1, p, 0.0), axis=-1, keepdims=True)
    row = i * tm + jax.lax.broadcasted_iota(jnp.int32, (r, 1), 0)
    loss = _focal_rows(pt, aw, row < n_edge, gamma)
    acc_ref[...] += jnp.sum(loss, keepdims=True)

    @pl.when(i == pl.num_programs(0) - 1)
    def _():
        out_ref[...] = jnp.broadcast_to(acc_ref[...], out_ref.shape)


# ----------------------------------------------------------------------------
# Wrapper: pack per-row aux streams, size tiles per call, single pallas_call.
# ----------------------------------------------------------------------------
def _pack_aux(weights_f32, payload_i32):
    # lane 0: f32 weight bit-pattern stored as int32 (no float ops touch it),
    # lane 1: int payload (obj target index / pred class bitmask).
    w_bits = jax.lax.bitcast_convert_type(weights_f32.astype(jnp.float32),
                                          jnp.int32)
    return jnp.stack([w_bits, payload_i32.astype(jnp.int32)], axis=1)


def fused_focal_loss(obj_probs, obj_tgt, obj_aw,
                     edge_probs, edge_hotmask, edge_aw, gamma, *, tm_cap=2048):
    n_obj, c_obj = obj_probs.shape
    n_edge, c_edge = edge_probs.shape
    r_obj = _round_up(n_obj, 8)
    tm = min(tm_cap, _round_up(max(n_edge, 1), 8))
    nblocks = max(1, pl.cdiv(n_edge, tm))

    obj_aux = _pack_aux(obj_aw, obj_tgt)          # (n_obj, 2)  int32
    edge_aux = _pack_aux(edge_aw, edge_hotmask)   # (n_edge, 2) int32

    kernel = functools.partial(_fused_focal_kernel, gamma=float(gamma),
                               n_obj=n_obj, n_edge=n_edge, tm=tm)

    out = pl.pallas_call(
        kernel,
        out_shape=jax.ShapeDtypeStruct((8, 128), jnp.float32),
        grid_spec=pltpu.PrefetchScalarGridSpec(
            num_scalar_prefetch=0,
            grid=(nblocks,),
            in_specs=[
                pl.BlockSpec((r_obj, c_obj), lambda i: (0, 0)),  # obj probs
                pl.BlockSpec((r_obj, 2), lambda i: (0, 0)),      # obj aux
                pl.BlockSpec((tm, c_edge), lambda i: (i, 0)),    # pred probs
                pl.BlockSpec((tm, 2), lambda i: (i, 0)),         # pred aux
            ],
            out_specs=pl.BlockSpec((8, 128), lambda i: (0, 0)),
            scratch_shapes=[pltpu.VMEM((1, 1), jnp.float32)],
        ),
        compiler_params=pltpu.CompilerParams(
            dimension_semantics=("arbitrary",)),
    )(obj_probs, obj_aux, edge_probs, edge_aux)
    return out[0, 0]


# ----------------------------------------------------------------------------
# Ground-truth preparation (data-dependent scatters, plain JAX in the wrapper).
# ----------------------------------------------------------------------------
def prepare_obj_rows(gt_obj, obj_w, alpha):
    n = gt_obj.shape[0]
    tgt = gt_obj.astype(jnp.int32)
    aw = (alpha / n) * obj_w.astype(jnp.float32)[tgt]   # folds alpha & 1/N mean
    return tgt, aw


def prepare_pred_rows(gt_obj, gt_rel, pred_w, beta, num_rel_classes=27):
    insnum = gt_obj.shape[0]
    m = insnum * insnum - insnum
    idx_i = gt_rel[:, 0].astype(jnp.int32)
    idx_j = gt_rel[:, 1].astype(jnp.int32)
    cls = gt_rel[:, 2].astype(jnp.int32)
    row = jnp.where(idx_i < idx_j,
                    idx_i * (insnum - 1) + idx_j - 1,
                    idx_i * (insnum - 1) + idx_j)
    row = jnp.where(idx_i != idx_j, row, m)          # self-relations -> dummy row
    # Dense multi-hot scatter mirroring the PyTorch assignment exactly
    # (idempotent per (row, cls); multiple relations per ordered pair kept).
    hot = jnp.zeros((m + 1, num_rel_classes), jnp.float32).at[row, cls].max(1.0)
    hot = hot[:m]
    no_rel = jnp.sum(hot, axis=1) == 0
    hot = hot.at[:, 0].set(jnp.where(no_rel, 1.0, hot[:, 0]))
    # Compact per-row encodings streamed to the kernel.
    bits = jnp.left_shift(jnp.ones((), jnp.int32),
                          jnp.arange(num_rel_classes, dtype=jnp.int32))
    hotmask = jnp.sum(hot.astype(jnp.int32) * bits[None, :], axis=1)
    aw = (beta / m) * (hot @ pred_w.astype(jnp.float32))  # folds beta & 1/M mean
    return hotmask.astype(jnp.int32), aw.astype(jnp.float32)


# ----------------------------------------------------------------------------
# get_loss.forward
# ----------------------------------------------------------------------------
def get_loss_forward(node_output, edge_output, gt_obj, gt_rel,
                     *, alpha, beta, gamma, obj_w, pred_w):
    obj_tgt, obj_aw = prepare_obj_rows(gt_obj, obj_w, alpha)
    pred_mask, pred_aw = prepare_pred_rows(gt_obj, gt_rel, pred_w, beta)
    # alpha/beta and the per-loss means are folded into the per-row weights, so
    # the fused kernel returns the final combined loss directly.
    return fused_focal_loss(node_output, obj_tgt, obj_aw,
                            edge_output, pred_mask, pred_aw, gamma)


# ----------------------------------------------------------------------------
# Pure-JAX reference (dense one-hot path, mirrors the PyTorch module) — test only.
# ----------------------------------------------------------------------------
def _prepare_onehot_objgt_ref(gt_obj, num_obj_classes=160):
    return jax.nn.one_hot(gt_obj, num_obj_classes, dtype=jnp.float32)


def _prepare_onehot_predgt_ref(gt_obj, gt_rel, num_rel_classes=27):
    insnum = gt_obj.shape[0]
    m = insnum * insnum - insnum
    idx_i = gt_rel[:, 0]
    idx_j = gt_rel[:, 1]
    cls = gt_rel[:, 2]
    row = jnp.where(idx_i < idx_j,
                    idx_i * (insnum - 1) + idx_j - 1,
                    idx_i * (insnum - 1) + idx_j)
    row = jnp.where(idx_i != idx_j, row, m)
    onehot = jnp.zeros((m + 1, num_rel_classes), jnp.float32)
    onehot = onehot.at[row, cls].max(1.0)
    onehot = onehot[:m]
    row_sum = jnp.sum(onehot, axis=1)
    onehot = onehot.at[:, 0].set(jnp.where(row_sum == 0, 1.0, onehot[:, 0]))
    return onehot


def _focal_loss_ref(probs, onehot, w, gamma):
    pt = jnp.sum(probs * onehot, axis=1)
    aw = jnp.sum(w[None, :] * onehot, axis=1)
    return jnp.mean(-aw * jnp.power(1.0 - pt, gamma) * jnp.log(pt))


if __name__ == "__main__":
    key = jax.random.PRNGKey(0)
    k1, k2, k3, k4, k5 = jax.random.split(key, 5)

    # Small synthetic scene: 8 object instances, 12 distinct relations,
    # plus 2 self-relations (skipped by the module) and 1 duplicate-pair
    # relation with a different class (exercises the multi-hot path).
    insnum = 8
    num_obj_classes = 160
    num_rel_classes = 27
    num_rel = 12
    m = insnum * insnum - insnum

    # Model outputs are probabilities (FocalLoss use_softmax=False).
    node_output = jax.nn.softmax(
        jax.random.normal(k1, (insnum, num_obj_classes), jnp.float32), axis=-1)
    edge_output = jax.nn.softmax(
        jax.random.normal(k2, (m, num_rel_classes), jnp.float32), axis=-1)

    gt_obj = jax.random.randint(k3, (insnum,), 0, num_obj_classes, jnp.int32)

    pair_ids = jax.random.permutation(k4, m)[:num_rel]
    rel_i = pair_ids // (insnum - 1)
    rem = pair_ids % (insnum - 1)
    rel_j = jnp.where(rem < rel_i, rem, rem + 1)
    rel_cls = jax.random.randint(k5, (num_rel,), 1, num_rel_classes, jnp.int32)
    gt_rel = jnp.stack([rel_i, rel_j, rel_cls], axis=1).astype(jnp.int32)
    self_rel = jnp.array([[0, 0, 5], [3, 3, 7]], jnp.int32)
    dup_rel = jnp.stack([rel_i[0], rel_j[0],
                         (rel_cls[0] % 26) + 1])[None, :].astype(jnp.int32)
    gt_rel = jnp.concatenate([gt_rel, self_rel, dup_rel], axis=0)

    # Hyper-parameters / per-class focal weights (deterministic, in-script).
    alpha_hp, beta_hp, gamma_hp = 0.5, 1.0, 2.0
    obj_w = 0.25 + 0.75 * jax.random.uniform(
        jax.random.PRNGKey(1), (num_obj_classes,), jnp.float32)
    pred_w = 0.25 + 0.75 * jax.random.uniform(
        jax.random.PRNGKey(2), (num_rel_classes,), jnp.float32)

    loss_fn = jax.jit(functools.partial(
        get_loss_forward, alpha=alpha_hp, beta=beta_hp, gamma=gamma_hp,
        obj_w=obj_w, pred_w=pred_w))
    loss = loss_fn(node_output, edge_output, gt_obj, gt_rel)
    loss = jax.block_until_ready(loss)

    # Sanity check against a pure-JAX dense reference of the same math.
    obj_oh = _prepare_onehot_objgt_ref(gt_obj)
    pred_oh = _prepare_onehot_predgt_ref(gt_obj, gt_rel)
    ref = (alpha_hp * _focal_loss_ref(node_output, obj_oh, obj_w, gamma_hp)
           + beta_hp * _focal_loss_ref(edge_output, pred_oh, pred_w, gamma_hp))
    assert jnp.allclose(loss, ref, rtol=1e-4, atol=1e-6), (loss, ref)

    print("KERNEL_OK")
</pallas_src>

<mosaic_0001>
module attributes {stable_mosaic.version = 11 : i64} {
  func.func @_fused_focal_kernel(%arg0: i32, %arg1: memref<8x160xf32, #tpu.memory_space<vmem>>, %arg2: memref<8x2xi32, #tpu.memory_space<vmem>>, %arg3: memref<56x27xf32, #tpu.memory_space<vmem>>, %arg4: memref<56x2xi32, #tpu.memory_space<vmem>>, %arg5: memref<8x128xf32, #tpu.memory_space<vmem>>, %arg6: memref<1x1xf32, #tpu.memory_space<vmem>>) attributes {dimension_semantics = [#tpu.dimension_semantics<arbitrary>], iteration_bounds = array<i64: 1>, scalar_prefetch = 0 : i64, scratch_operands = 1 : i64, tpu.core_type = #tpu.core_type<tc>, window_params = [{pipeline_mode = #tpu.pipeline_mode<synchronous>, transform_indices = @transform_0, window_bounds = array<i64: 8, 160>}, {pipeline_mode = #tpu.pipeline_mode<synchronous>, transform_indices = @transform_1, window_bounds = array<i64: 8, 2>}, {transform_indices = @transform_2, window_bounds = array<i64: 56, 27>}, {transform_indices = @transform_3, window_bounds = array<i64: 56, 2>}, {pipeline_mode = #tpu.pipeline_mode<synchronous>, transform_indices = @transform_4, window_bounds = array<i64: 8, 128>}]} {
    %c0_i32 = arith.constant 0 : i32
    %0 = arith.cmpi eq, %arg0, %c0_i32 : i32
    %1 = arith.extui %0 : i1 to i32
    %c0_i32_0 = arith.constant 0 : i32
    %2 = arith.cmpi ne, %1, %c0_i32_0 : i32
    scf.if %2 {
      %c0_18 = arith.constant 0 : index
      %c0_19 = arith.constant 0 : index
      %48 = vector.load %arg1[%c0_18, %c0_19] : memref<8x160xf32, #tpu.memory_space<vmem>>, vector<8x160xf32>
      %c0_20 = arith.constant 0 : index
      %c0_21 = arith.constant 0 : index
      %49 = vector.load %arg2[%c0_20, %c0_21] : memref<8x2xi32, #tpu.memory_space<vmem>>, vector<8x2xi32>
      %50 = vector.extract_strided_slice %49 {offsets = [0, 0], sizes = [8, 1], strides = [1, 1]} : vector<8x2xi32> to vector<8x1xi32>
      %51 = tpu.bitcast %50 : vector<8x1xi32> -> vector<8x1xf32>
      %52 = vector.extract_strided_slice %49 {offsets = [0, 1], sizes = [8, 1], strides = [1, 1]} : vector<8x2xi32> to vector<8x1xi32>
      %53 = tpu.iota {dimensions = array<i32: 1>} : vector<8x160xi32>
      %54 = vector.broadcast %52 : vector<8x1xi32> to vector<8x160xi32>
      %55 = arith.cmpi eq, %53, %54 : vector<8x160xi32>
      %cst_22 = arith.constant 0.000000e+00 : f32
      %56 = vector.broadcast %cst_22 : f32 to vector<8x160xf32>
      %57 = arith.select %55, %48, %56 : vector<8x160xi1>, vector<8x160xf32>
      %cst_23 = arith.constant dense<0.000000e+00> : vector<8xf32>
      %58 = vector.multi_reduction <add>, %57, %cst_23 [1] : vector<8x160xf32> to vector<8xf32>
      %59 = vector.shape_cast %58 : vector<8xf32> to vector<8x1xf32>
      %60 = tpu.iota {dimensions = array<i32: 0>} : vector<8x1xi32>
      %c8_i32 = arith.constant 8 : i32
      %61 = vector.broadcast %c8_i32 : i32 to vector<8x1xi32>
      %62 = arith.cmpi slt, %60, %61 : vector<8x1xi32>
      %cst_24 = arith.constant 0.000000e+00 : f32
      %63 = vector.broadcast %cst_24 : f32 to vector<8x1xf32>
      %64 = arith.select %62, %51, %63 : vector<8x1xi1>, vector<8x1xf32>
      %cst_25 = arith.constant 1.000000e+00 : f32
      %65 = vector.broadcast %cst_25 : f32 to vector<8x1xf32>
      %66 = arith.select %62, %59, %65 : vector<8x1xi1>, vector<8x1xf32>
      %cst_26 = arith.constant 0.000000e+00 : f32
      %67 = vector.broadcast %cst_26 : f32 to vector<8x1xf32>
      %68 = arith.subf %67, %64 : vector<8x1xf32>
      %cst_27 = arith.constant 1.000000e+00 : f32
      %69 = vector.broadcast %cst_27 : f32 to vector<8x1xf32>
      %70 = arith.subf %69, %66 : vector<8x1xf32>
      %71 = arith.mulf %70, %70 : vector<8x1xf32>
      %72 = arith.mulf %68, %71 : vector<8x1xf32>
      %73 = math.log %66 : vector<8x1xf32>
      %74 = arith.mulf %72, %73 : vector<8x1xf32>
      %75 = vector.shape_cast %74 : vector<8x1xf32> to vector<1x8x1xf32>
      %cst_28 = arith.constant dense<0.000000e+00> : vector<1xf32>
      %76 = vector.multi_reduction <add>, %75, %cst_28 [1, 2] : vector<1x8x1xf32> to vector<1xf32>
      %77 = vector.shape_cast %76 : vector<1xf32> to vector<1x1x1xf32>
      %78 = vector.extract %77[0, 0, 0] : f32 from vector<1x1x1xf32>
      %79 = vector.broadcast %78 : f32 to vector<1x1xf32>
      %c0_29 = arith.constant 0 : index
      %c0_30 = arith.constant 0 : index
      %80 = vector.load %arg6[%c0_29, %c0_30] : memref<1x1xf32, #tpu.memory_space<vmem>>, vector<1x1xf32>
      tpu.vector_store %arg6[%c0_29, %c0_30], %79 {strides = array<i32>} : memref<1x1xf32, #tpu.memory_space<vmem>>, vector<1x1xf32>,
    } else {
    }
    %c0 = arith.constant 0 : index
    %c0_1 = arith.constant 0 : index
    %3 = vector.load %arg3[%c0, %c0_1] : memref<56x27xf32, #tpu.memory_space<vmem>>, vector<56x27xf32>
    %c0_2 = arith.constant 0 : index
    %c0_3 = arith.constant 0 : index
    %4 = vector.load %arg4[%c0_2, %c0_3] : memref<56x2xi32, #tpu.memory_space<vmem>>, vector<56x2xi32>
    %5 = vector.extract_strided_slice %4 {offsets = [0, 0], sizes = [56, 1], strides = [1, 1]} : vector<56x2xi32> to vector<56x1xi32>
    %6 = tpu.bitcast %5 : vector<56x1xi32> -> vector<56x1xf32>
    %7 = vector.extract_strided_slice %4 {offsets = [0, 1], sizes = [56, 1], strides = [1, 1]} : vector<56x2xi32> to vector<56x1xi32>
    %8 = tpu.iota {dimensions = array<i32: 1>} : vector<56x27xi32>
    %9 = vector.broadcast %7 : vector<56x1xi32> to vector<56x27xi32>
    %10 = arith.shrsi %9, %8 : vector<56x27xi32>
    %c1_i32 = arith.constant 1 : i32
    %11 = vector.broadcast %c1_i32 : i32 to vector<56x27xi32>
    %12 = arith.andi %10, %11 : vector<56x27xi32>
    %c1_i32_4 = arith.constant 1 : i32
    %13 = vector.broadcast %c1_i32_4 : i32 to vector<56x27xi32>
    %14 = arith.cmpi eq, %12, %13 : vector<56x27xi32>
    %cst = arith.constant 0.000000e+00 : f32
    %15 = vector.broadcast %cst : f32 to vector<56x27xf32>
    %16 = arith.select %14, %3, %15 : vector<56x27xi1>, vector<56x27xf32>
    %cst_5 = arith.constant dense<0.000000e+00> : vector<56xf32>
    %17 = vector.multi_reduction <add>, %16, %cst_5 [1] : vector<56x27xf32> to vector<56xf32>
    %18 = vector.shape_cast %17 : vector<56xf32> to vector<56x1xf32>
    %c56_i32 = arith.constant 56 : i32
    %19 = arith.muli %arg0, %c56_i32 : i32
    %20 = tpu.iota {dimensions = array<i32: 0>} : vector<56x1xi32>
    %21 = vector.broadcast %19 : i32 to vector<56x1xi32>
    %22 = arith.addi %21, %20 : vector<56x1xi32>
    %c56_i32_6 = arith.constant 56 : i32
    %23 = vector.broadcast %c56_i32_6 : i32 to vector<56x1xi32>
    %24 = arith.cmpi slt, %22, %23 : vector<56x1xi32>
    %cst_7 = arith.constant 0.000000e+00 : f32
    %25 = vector.broadcast %cst_7 : f32 to vector<56x1xf32>
    %26 = arith.select %24, %6, %25 : vector<56x1xi1>, vector<56x1xf32>
    %cst_8 = arith.constant 1.000000e+00 : f32
    %27 = vector.broadcast %cst_8 : f32 to vector<56x1xf32>
    %28 = arith.select %24, %18, %27 : vector<56x1xi1>, vector<56x1xf32>
    %cst_9 = arith.constant 0.000000e+00 : f32
    %29 = vector.broadcast %cst_9 : f32 to vector<56x1xf32>
    %30 = arith.subf %29, %26 : vector<56x1xf32>
    %cst_10 = arith.constant 1.000000e+00 : f32
    %31 = vector.broadcast %cst_10 : f32 to vector<56x1xf32>
    %32 = arith.subf %31, %28 : vector<56x1xf32>
    %33 = arith.mulf %32, %32 : vector<56x1xf32>
    %34 = arith.mulf %30, %33 : vector<56x1xf32>
    %35 = math.log %28 : vector<56x1xf32>
    %36 = arith.mulf %34, %35 : vector<56x1xf32>
    %c0_11 = arith.constant 0 : index
    %c0_12 = arith.constant 0 : index
    %37 = vector.load %arg6[%c0_11, %c0_12] : memref<1x1xf32, #tpu.memory_space<vmem>>, vector<1x1xf32>
    %38 = vector.shape_cast %36 : vector<56x1xf32> to vector<1x56x1xf32>
    %cst_13 = arith.constant dense<0.000000e+00> : vector<1xf32>
    %39 = vector.multi_reduction <add>, %38, %cst_13 [1, 2] : vector<1x56x1xf32> to vector<1xf32>
    %40 = vector.shape_cast %39 : vector<1xf32> to vector<1x1x1xf32>
    %41 = vector.extract %40[0, 0, 0] : f32 from vector<1x1x1xf32>
    %42 = vector.broadcast %41 : f32 to vector<1x1xf32>
    %43 = arith.addf %37, %42 : vector<1x1xf32>
    %c0_14 = arith.constant 0 : index
    %c0_15 = arith.constant 0 : index
    %44 = vector.load %arg6[%c0_14, %c0_15] : memref<1x1xf32, #tpu.memory_space<vmem>>, vector<1x1xf32>
    tpu.vector_store %arg6[%c0_14, %c0_15], %43 {strides = array<i32>} : memref<1x1xf32, #tpu.memory_space<vmem>>, vector<1x1xf32>,
    %c0_i32_16 = arith.constant 0 : i32
    %45 = arith.cmpi eq, %arg0, %c0_i32_16 : i32
    %46 = arith.extui %45 : i1 to i32
    %c0_i32_17 = arith.constant 0 : i32
    %47 = arith.cmpi ne, %46, %c0_i32_17 : i32
    scf.if %47 {
      %c0_18 = arith.constant 0 : index
      %c0_19 = arith.constant 0 : index
      %48 = vector.load %arg6[%c0_18, %c0_19] : memref<1x1xf32, #tpu.memory_space<vmem>>, vector<1x1xf32>
      %49 = vector.shape_cast %48 : vector<1x1xf32> to vector<1x1xf32>
      %50 = vector.broadcast %49 : vector<1x1xf32> to vector<8x128xf32>
      %c0_20 = arith.constant 0 : index
      %c0_21 = arith.constant 0 : index
      %51 = vector.load %arg5[%c0_20, %c0_21] : memref<8x128xf32, #tpu.memory_space<vmem>>, vector<8x128xf32>
      tpu.vector_store %arg5[%c0_20, %c0_21], %50 {strides = array<i32>} : memref<8x128xf32, #tpu.memory_space<vmem>>, vector<8x128xf32>,
    } else {
    }
    return
  }
  func.func @transform_0(%arg0: i32) -> (i32, i32) {
    %c0_i32 = arith.constant 0 : i32
    %c0_i32_0 = arith.constant 0 : i32
    %c0_i32_1 = arith.constant 0 : i32
    return %c0_i32, %c0_i32_0 : i32, i32
  }
  func.func @transform_1(%arg0: i32) -> (i32, i32) {
    %c0_i32 = arith.constant 0 : i32
    %c0_i32_0 = arith.constant 0 : i32
    %c0_i32_1 = arith.constant 0 : i32
    return %c0_i32, %c0_i32_0 : i32, i32
  }
  func.func @transform_2(%arg0: i32) -> (i32, i32) {
    %c0_i32 = arith.constant 0 : i32
    %c0_i32_0 = arith.constant 0 : i32
    return %arg0, %c0_i32 : i32, i32
  }
  func.func @transform_3(%arg0: i32) -> (i32, i32) {
    %c0_i32 = arith.constant 0 : i32
    %c0_i32_0 = arith.constant 0 : i32
    return %arg0, %c0_i32 : i32, i32
  }
  func.func @transform_4(%arg0: i32) -> (i32, i32) {
    %c0_i32 = arith.constant 0 : i32
    %c0_i32_0 = arith.constant 0 : i32
    %c0_i32_1 = arith.constant 0 : i32
    return %c0_i32, %c0_i32_0 : i32, i32
  }
}

</mosaic_0001>

<llo_original>
// kernel: get_loss_forward.1
$region0: #{get_loss_forward.1}
  #allocation0 [shape = 'u32[]', space=smem, size = 0x4, offset = 0x4, fixed_abs, tag = 'smem constant byte address 0x4 - core index']
  #allocation1 [shape = 'u32[144,128]{1,0:T(1,128)}', space=vmem, size = 0x12000, scoped, tag = 'internal scratch']
  #allocation2 [shape = 'f32[1,1]{1,0:T(1,128)}', space=vmem, size = 0x200, scoped, tag = 'scratch operand']
  %s0 = inlined_call_operand.vmem [shape: f32[8,160], index: 0, kind: input, shape index: {}]
  %s1 = inlined_call_operand.vmem [shape: s32[8,2], index: 1, kind: input, shape index: {}]
  %s2 = inlined_call_operand.vmem [shape: f32[56,27], index: 2, kind: input, shape index: {}]
  %s3 = inlined_call_operand.vmem [shape: s32[56,2], index: 3, kind: input, shape index: {}]
  %s4 = inlined_call_operand.vmem [shape: f32[8,128], index: 4, kind: output, shape index: {}]
  %s5 = sld [smem:[#allocation0]]
  $region34: #{get_loss_forward.1} parent=0
    _
  %s7 = ssub.s32 1, %s5
  %s8 = scalar_select 0, %s7, %s5
  // Predicated region
  $region2: #{get_loss_forward.1} parent=0 // pred_check
    _
  $region3: #{get_loss_forward.1} parent=0 // pred_check_branch
    %10 = sbr.rel (0) target = $region5
  $region4: #{get_loss_forward.1} parent=0 // pred_region
    _
  $region5: #{get_loss_forward.1} parent=0 // pred_fallthru
    _
  // Predicated region
  $region6: #{get_loss_forward.1} parent=0 // pred_check
    _
  $region7: #{get_loss_forward.1} parent=0 // pred_check_branch
    %12 = sbr.rel (0) target = $region9
  $region8: #{get_loss_forward.1} parent=0 // pred_region
    _
  $region9: #{get_loss_forward.1} parent=0 // pred_fallthru
    _
  // Predicated region
  $region10: #{get_loss_forward.1} parent=0 // pred_check
    _
  $region11: #{get_loss_forward.1} parent=0 // pred_check_branch
    %14 = sbr.rel (0) target = $region13
  $region12: #{get_loss_forward.1} parent=0 // pred_region
    _
  $region13: #{get_loss_forward.1} parent=0 // pred_fallthru
    _
  // Predicated region
  $region14: #{get_loss_forward.1} parent=0 // pred_check
    _
  $region15: #{get_loss_forward.1} parent=0 // pred_check_branch
    %16 = sbr.rel (0) target = $region17
  $region16: #{get_loss_forward.1} parent=0 // pred_region
    _
  $region17: #{get_loss_forward.1} parent=0 // pred_fallthru
    _
  %p17 = scmp.eq.s32.totalorder 0, 0
  // Predicated region
  $region18: #{get_loss_forward.1} parent=0 // pred_check
    %p18 = pneg %p17
  $region19: #{get_loss_forward.1} parent=0 // pred_check_branch
    %20 = sbr.rel (%p18) target = $region21
  $region20: #{get_loss_forward.1} parent=0 // pred_region
    %v21 = vld [vmem:[%s0] sm:$0xff]
    %v22 = vld [vmem:[%s0 + $0x8] sm:$0xff]
    %v23 = vld [vmem:[%s1] sm:$0xff]
    %v25 = vlaneseq
    %v26 = vand.u32 %v25, 127
    %v27 = vadd.s32 %v26, 128
    %28 = vset.pattern.permute.xlu0 1
    %29 = vperm.xlu0 %28, %v23
    %v30 = vpop.permute.xlu0 %29
    %vm31 = vcmp.eq.s32.totalorder %v26, %v30
    %vm32 = vcmp.eq.s32.totalorder %v27, %v30
    %v33 = vsel %vm31, %v21, 0.0
    %v34 = vsel %vm32, %v22, 0.0
    %vm35 = vcmask 261120
    %v36 = vsel %vm35, %v34, 0.0
    %v37 = vadd.f32 %v33, %v36
    %38 = vadd.xlane.f32.xlu0 %v37
    %v39 = vpop.xlane.xlu0 %38
    %v40 = vlaneseq
    %v41 = vshrl.u32 %v40, 7
    %vm42 = vcmp.lt.s32.totalorder %v41, 8
    %v43 = vsel %vm42, %v23, 0.0
    %v44 = vsel %vm42, %v39, 1.0
    %v45 = vsub.f32 0.0, %v43
    %v46 = vsub.f32 1.0, %v44
    %v47 = vmul.f32 %v46, %v46
    %v48 = vmul.f32 %v45, %v47
    %v49 = vlog2.pop %v44
    %v50 = vmul.f32 %v49, 0.6931472
    %v51 = vmul.f32 %v48, %v50
    %vm52 = vcmask 7168
    %v53 = vsel %vm52, %v51, 0.0
    %54 = vadd.xlane.f32.xlu0 %v53
    %v55 = vpop.xlane.xlu0 %54
    %v56 = vrot.slane %v55, 4
    %v57 = vadd.f32 %v55, %v56
    %v58 = vrot.slane %v57, 2
    %v59 = vadd.f32 %v57, %v58
    %v60 = vrot.slane %v59, 1
    %v61 = vadd.f32 %v59, %v60
    %s62 = vtos %v61
    %v63 = vstv %s62
    %vm64 = vcmask 0
    %65 = vst.msk [vmem:[#allocation2] sm:$0x1] %vm64, %v63
  $region21: #{get_loss_forward.1} parent=0 // pred_fallthru
    _
  %v66 = vld [vmem:[%s2] sm:$0xff]
  %v67 = vld [vmem:[%s2 + $0x8] sm:$0xff]
  %v68 = vld [vmem:[%s2 + $0x10] sm:$0xff]
  %v69 = vld [vmem:[%s2 + $0x18] sm:$0xff]
  %v70 = vld [vmem:[%s2 + $0x20] sm:$0xff]
  %v71 = vld [vmem:[%s2 + $0x28] sm:$0xff]
  %v72 = vld [vmem:[%s2 + $0x30] sm:$0xff]
  %v73 = vld [vmem:[%s3] sm:$0xff]
  %v74 = vld [vmem:[%s3 + $0x8] sm:$0xff]
  %v75 = vld [vmem:[%s3 + $0x10] sm:$0xff]
  %v76 = vld [vmem:[%s3 + $0x18] sm:$0xff]
  %v77 = vld [vmem:[%s3 + $0x20] sm:$0xff]
  %v78 = vld [vmem:[%s3 + $0x28] sm:$0xff]
  %v79 = vld [vmem:[%s3 + $0x30] sm:$0xff]
  %v87 = vlaneseq
  %v88 = vand.u32 %v87, 127
  %89 = vset.pattern.permute.xlu0 1
  %90 = vperm.xlu0 %89, %v73
  %v91 = vpop.permute.xlu0 %90
  %92 = vset.pattern.permute.xlu0 1
  %93 = vperm.xlu0 %92, %v74
  %v94 = vpop.permute.xlu0 %93
  %95 = vset.pattern.permute.xlu0 1
  %96 = vperm.xlu0 %95, %v75
  %v97 = vpop.permute.xlu0 %96
  %98 = vset.pattern.permute.xlu0 1
  %99 = vperm.xlu0 %98, %v76
  %v100 = vpop.permute.xlu0 %99
  %101 = vset.pattern.permute.xlu0 1
  %102 = vperm.xlu0 %101, %v77
  %v103 = vpop.permute.xlu0 %102
  %104 = vset.pattern.permute.xlu0 1
  %105 = vperm.xlu0 %104, %v78
  %v106 = vpop.permute.xlu0 %105
  %107 = vset.pattern.permute.xlu0 1
  %108 = vperm.xlu0 %107, %v79
  %v109 = vpop.permute.xlu0 %108
  %v110 = vshra.s32 %v91, %v88
  %v111 = vshra.s32 %v94, %v88
  %v112 = vshra.s32 %v97, %v88
  %v113 = vshra.s32 %v100, %v88
  %v114 = vshra.s32 %v103, %v88
  %v115 = vshra.s32 %v106, %v88
  %v116 = vshra.s32 %v109, %v88
  %v117 = vand.u32 %v110, 1
  %v118 = vand.u32 %v111, 1
  %v119 = vand.u32 %v112, 1
  %v120 = vand.u32 %v113, 1
  %v121 = vand.u32 %v114, 1
  %v122 = vand.u32 %v115, 1
  %v123 = vand.u32 %v116, 1
  %vm124 = vcmp.eq.s32.totalorder %v117, 1
  %vm125 = vcmp.eq.s32.totalorder %v118, 1
  %vm126 = vcmp.eq.s32.totalorder %v119, 1
  %vm127 = vcmp.eq.s32.totalorder %v120, 1
  %vm128 = vcmp.eq.s32.totalorder %v121, 1
  %vm129 = vcmp.eq.s32.totalorder %v122, 1
  %vm130 = vcmp.eq.s32.totalorder %v123, 1
  %v131 = vsel %vm124, %v66, 0.0
  %v132 = vsel %vm125, %v67, 0.0
  %v133 = vsel %vm126, %v68, 0.0
  %v134 = vsel %vm127, %v69, 0.0
  %v135 = vsel %vm128, %v70, 0.0
  %v136 = vsel %vm129, %v71, 0.0
  %v137 = vsel %vm130, %v72, 0.0
  %vm138 = vcmask 220160
  %v139 = vsel %vm138, %v131, 0.0
  %140 = vadd.xlane.f32.xlu0 %v139
  %v141 = vpop.xlane.xlu0 %140
  %v142 = vsel %vm138, %v132, 0.0
  %143 = vadd.xlane.f32.xlu0 %v142
  %v144 = vpop.xlane.xlu0 %143
  %v145 = vsel %vm138, %v133, 0.0
  %146 = vadd.xlane.f32.xlu0 %v145
  %v147 = vpop.xlane.xlu0 %146
  %v148 = vsel %vm138, %v134, 0.0
  %149 = vadd.xlane.f32.xlu0 %v148
  %v150 = vpop.xlane.xlu0 %149
  %v151 = vsel %vm138, %v135, 0.0
  %152 = vadd.xlane.f32.xlu0 %v151
  %v153 = vpop.xlane.xlu0 %152
  %v154 = vsel %vm138, %v136, 0.0
  %155 = vadd.xlane.f32.xlu0 %v154
  %v156 = vpop.xlane.xlu0 %155
  %v157 = vsel %vm138, %v137, 0.0
  %158 = vadd.xlane.f32.xlu0 %v157
  %v159 = vpop.xlane.xlu0 %158
  %s160 = smul.u32 0, 56
  %v161 = vlaneseq
  %v162 = vshrl.u32 %v161, 7
  %v163 = vadd.s32 %v162, 8
  %v164 = vadd.s32 %v162, 16
  %v165 = vadd.s32 %v162, 24
  %v166 = vadd.s32 %v162, 32
  %v167 = vadd.s32 %v162, 40
  %v168 = vadd.s32 %v162, 48
  %v169 = vstv %s160
  %v170 = vadd.s32 %v169, %v162
  %v171 = vadd.s32 %v169, %v163
  %v172 = vadd.s32 %v169, %v164
  %v173 = vadd.s32 %v169, %v165
  %v174 = vadd.s32 %v169, %v166
  %v175 = vadd.s32 %v169, %v167
  %v176 = vadd.s32 %v169, %v168
  %vm177 = vcmp.lt.s32.totalorder %v170, 56
  %vm178 = vcmp.lt.s32.totalorder %v171, 56
  %vm179 = vcmp.lt.s32.totalorder %v172, 56
  %vm180 = vcmp.lt.s32.totalorder %v173, 56
  %vm181 = vcmp.lt.s32.totalorder %v174, 56
  %vm182 = vcmp.lt.s32.totalorder %v175, 56
  %vm183 = vcmp.lt.s32.totalorder %v176, 56
  %v184 = vsel %vm177, %v73, 0.0
  %v185 = vsel %vm178, %v74, 0.0
  %v186 = vsel %vm179, %v75, 0.0
  %v187 = vsel %vm180, %v76, 0.0
  %v188 = vsel %vm181, %v77, 0.0
  %v189 = vsel %vm182, %v78, 0.0
  %v190 = vsel %vm183, %v79, 0.0
  %v191 = vsel %vm177, %v141, 1.0
  %v192 = vsel %vm178, %v144, 1.0
  %v193 = vsel %vm179, %v147, 1.0
  %v194 = vsel %vm180, %v150, 1.0
  %v195 = vsel %vm181, %v153, 1.0
  %v196 = vsel %vm182, %v156, 1.0
  %v197 = vsel %vm183, %v159, 1.0
  %v198 = vsub.f32 0.0, %v184
  %v199 = vsub.f32 0.0, %v185
  %v200 = vsub.f32 0.0, %v186
  %v201 = vsub.f32 0.0, %v187
  %v202 = vsub.f32 0.0, %v188
  %v203 = vsub.f32 0.0, %v189
  %v204 = vsub.f32 0.0, %v190
  %v205 = vsub.f32 1.0, %v191
  %v206 = vsub.f32 1.0, %v192
  %v207 = vsub.f32 1.0, %v193
  %v208 = vsub.f32 1.0, %v194
  %v209 = vsub.f32 1.0, %v195
  %v210 = vsub.f32 1.0, %v196
  %v211 = vsub.f32 1.0, %v197
  %v212 = vmul.f32 %v205, %v205
  %v213 = vmul.f32 %v206, %v206
  %v214 = vmul.f32 %v207, %v207
  %v215 = vmul.f32 %v208, %v208
  %v216 = vmul.f32 %v209, %v209
  %v217 = vmul.f32 %v210, %v210
  %v218 = vmul.f32 %v211, %v211
  %v219 = vmul.f32 %v198, %v212
  %v220 = vmul.f32 %v199, %v213
  %v221 = vmul.f32 %v200, %v214
  %v222 = vmul.f32 %v201, %v215
  %v223 = vmul.f32 %v202, %v216
  %v224 = vmul.f32 %v203, %v217
  %v225 = vmul.f32 %v204, %v218
  %v226 = vlog2.pop %v191
  %v227 = vmul.f32 %v226, 0.6931472
  %v228 = vlog2.pop %v192
  %v229 = vmul.f32 %v228, 0.6931472
  %v230 = vlog2.pop %v193
  %v231 = vmul.f32 %v230, 0.6931472
  %v232 = vlog2.pop %v194
  %v233 = vmul.f32 %v232, 0.6931472
  %v234 = vlog2.pop %v195
  %v235 = vmul.f32 %v234, 0.6931472
  %v236 = vlog2.pop %v196
  %v237 = vmul.f32 %v236, 0.6931472
  %v238 = vlog2.pop %v197
  %v239 = vmul.f32 %v238, 0.6931472
  %v240 = vmul.f32 %v219, %v227
  %v241 = vmul.f32 %v220, %v229
  %v242 = vmul.f32 %v221, %v231
  %v243 = vmul.f32 %v222, %v233
  %v244 = vmul.f32 %v223, %v235
  %v245 = vmul.f32 %v224, %v237
  %v246 = vmul.f32 %v225, %v239
  %v247 = vld [vmem:[#allocation2] sm:$0x1]
  %vm248 = vcmask 7168
  %v249 = vsel %vm248, %v240, 0.0
  %v250 = vsel %vm248, %v241, 0.0
  %v251 = vadd.f32 %v249, %v250
  %v252 = vsel %vm248, %v242, 0.0
  %v253 = vadd.f32 %v251, %v252
  %v254 = vsel %vm248, %v243, 0.0
  %v255 = vadd.f32 %v253, %v254
  %v256 = vsel %vm248, %v244, 0.0
  %v257 = vadd.f32 %v255, %v256
  %v258 = vsel %vm248, %v245, 0.0
  %v259 = vadd.f32 %v257, %v258
  %v260 = vsel %vm248, %v246, 0.0
  %v261 = vadd.f32 %v259, %v260
  %262 = vadd.xlane.f32.xlu0 %v261
  %v263 = vpop.xlane.xlu0 %262
  %v264 = vrot.slane %v263, 4
  %v265 = vadd.f32 %v263, %v264
  %v266 = vrot.slane %v265, 2
  %v267 = vadd.f32 %v265, %v266
  %v268 = vrot.slane %v267, 1
  %v269 = vadd.f32 %v267, %v268
  %s270 = vtos %v269
  %v271 = vstv %s270
  %v272 = vadd.f32 %v247, %v271
  %vm273 = vcmask 0
  %274 = vst.msk [vmem:[#allocation2] sm:$0x1] %vm273, %v272
  // Predicated region
  $region22: #{get_loss_forward.1} parent=0 // pred_check
    %p275 = pneg %p17
  $region23: #{get_loss_forward.1} parent=0 // pred_check_branch
    %277 = sbr.rel (%p275) target = $region25
  $region24: #{get_loss_forward.1} parent=0 // pred_region
    %v278 = vld [vmem:[#allocation2] sm:$0x1]
    %v280 = vlaneseq
    %v281 = vshrl.u32 %v280, 7
    %v282 = vsub.s32 0, %v281
    %v283 = vrot.slane %v278, %v282
    %284 = vset.pattern.permute.xlu0 0
    %285 = vperm.xlu0 %284, %v283
    %v286 = vpop.permute.xlu0 %285
    %288 = vst [vmem:[%s4] sm:$0xff] %v286
  $region25: #{get_loss_forward.1} parent=0 // pred_fallthru
    _
  // Predicated region
  $region26: #{get_loss_forward.1} parent=0 // pred_check
    _
  $region27: #{get_loss_forward.1} parent=0 // pred_check_branch
    %290 = sbr.rel (0) target = $region29
  $region28: #{get_loss_forward.1} parent=0 // pred_region
    _
  $region29: #{get_loss_forward.1} parent=0 // pred_fallthru
    _
  // Predicated region
  $region30: #{get_loss_forward.1} parent=0 // pred_check
    _
  $region31: #{get_loss_forward.1} parent=0 // pred_check_branch
    %292 = sbr.rel (0) target = $region33
  $region32: #{get_loss_forward.1} parent=0 // pred_region
    _
  $region33: #{get_loss_forward.1} parent=0 // pred_fallthru
    _

</llo_original>
